<compile_context>
chip_gen: v7x
topology: tpu7x:2x2x1
jax: 0.10.0
libtpu: 0.0.40
codegen_flags: <defaults>
</compile_context>

<pallas_src>
import functools
import math

import jax
import jax.numpy as jnp
from jax.experimental import pallas as pl
from jax.experimental.pallas import tpu as pltpu

# ---- module hyper-parameters (consistent with the nn.Module) ---------------
S_DIM = 8
OUT_DIM = 2
LATENT_DIM = 4
HIDDEN = 64

IN_DIM = S_DIM * 2 + LATENT_DIM          # 20
OUT3_DIM = S_DIM * 2 * OUT_DIM           # 32  (combined theta|phi flat width)
HALF = OUT_DIM * S_DIM                   # 16  (flat size of theta / phi halves)

PHI_SCALE = math.pi                      # phi_max - (-pi/2) = pi
LANE = 128                               # TPU lane width


def _laplace_kernel(x_ref, w1_ref, b1_ref, w2_ref, b2_ref, w3_ref, b3_ref,
                    scale_ref, out_ref, *, act_dtype):
    """Feature-major MLP: all intermediates are (features, tb) with tb on lanes."""
    x = x_ref[...]                                                   # (20, tb)

    # Linear -> Tanh -> Linear -> Tanh -> Linear.  MXU matmuls accumulate in
    # f32; hidden tanhs run in `act_dtype` (bf16 on v6e/v7x fast path).
    z1 = jnp.dot(w1_ref[...], x, preferred_element_type=jnp.float32) + b1_ref[...]
    h1 = jnp.tanh(z1.astype(act_dtype))                              # (64, tb)
    z2 = jnp.dot(w2_ref[...], h1, preferred_element_type=jnp.float32) + b2_ref[...]
    h2 = jnp.tanh(z2.astype(act_dtype))                              # (64, tb)
    z3 = jnp.dot(w3_ref[...], h2, preferred_element_type=jnp.float32) + b3_ref[...]

    # Epilogue (always f32):
    #   rows [0, HALF)      -> theta = tanh(.) * pi
    #   rows [HALF, OUT3)   -> phi   = tanh(.) * pi/2   (affine consts cancel)
    # scale_ref is a resident (OUT3_DIM, 1) column broadcast across lanes.
    out_ref[...] = jnp.tanh(z3) * scale_ref[...]                     # (32, tb)


def laplace_representation_func(i, params, *, precision="f32", block_b=None):
    """Pallas forward pass.

    i: (B, s_dim*2+latent_dim) float32.
    params: (w1, b1, w2, b2, w3, b3) with PyTorch-style weights (out, in) and
            column biases (out, 1).
    Returns (theta, phi), each (B, out_dim, s_dim) float32.
    """
    assert precision in ("f32", "bf16")
    w1, b1, w2, b2, w3, b3 = params
    B = i.shape[0]
    assert i.shape[1] == IN_DIM

    # Batch tile: multiple of 128 (lane alignment for unmasked stores).
    if block_b is None:
        block_b = 512 if precision == "bf16" else 256   # vreg-pressure aware
    block_b = max(LANE, (block_b // LANE) * LANE)

    n_lane_tiles = pl.cdiv(B, LANE)
    tb = min(block_b, n_lane_tiles * LANE)
    # Guarantee >=2 grid steps when there is >=2 lane-tiles of work so the
    # "parallel" batch axis shards across v7x's two TensorCores.
    if n_lane_tiles >= 2 and pl.cdiv(B, tb) < 2:
        tb = pl.cdiv(n_lane_tiles, 2) * LANE
    padded = pl.cdiv(B, tb) * tb
    grid_b = padded // tb

    # Feature-major input: (IN_DIM, padded) with batch on lanes.
    x_t = i.T
    if padded != B:
        x_t = jnp.pad(x_t, ((0, 0), (0, padded - B)))

    mxu_dtype = jnp.bfloat16 if precision == "bf16" else jnp.float32
    act_dtype = jnp.bfloat16 if precision == "bf16" else jnp.float32
    x_t = x_t.astype(mxu_dtype)
    w1c = w1.astype(mxu_dtype)
    w2c = w2.astype(mxu_dtype)
    w3c = w3.astype(mxu_dtype)

    # Precomputed epilogue scale (resident input; built once, not per step).
    scale = jnp.where(
        jnp.arange(OUT3_DIM) < HALF,
        jnp.float32(math.pi),
        jnp.float32(PHI_SCALE / 2.0),
    ).astype(jnp.float32).reshape(OUT3_DIM, 1)

    elem_bytes = 2 if precision == "bf16" else 4
    flops = 2 * padded * (IN_DIM * HIDDEN + HIDDEN * HIDDEN + HIDDEN * OUT3_DIM)
    transcendentals = padded * (HIDDEN + HIDDEN + OUT3_DIM)
    bytes_accessed = (
        padded * IN_DIM * elem_bytes + padded * OUT3_DIM * 4
        + (IN_DIM * HIDDEN + HIDDEN * HIDDEN + HIDDEN * OUT3_DIM) * elem_bytes
        + (2 * HIDDEN + 2 * OUT3_DIM) * 4
    )

    kernel = functools.partial(_laplace_kernel, act_dtype=act_dtype)

    out_fm = pl.pallas_call(
        kernel,
        out_shape=jax.ShapeDtypeStruct((OUT3_DIM, padded), jnp.float32),
        grid=(grid_b,),
        in_specs=[
            # x tile varies with the batch grid index (lane dim = batch).
            pl.BlockSpec((IN_DIM, tb), lambda b: (0, b)),
            # Weights / biases / scale: constant index_maps -> resident VMEM.
            pl.BlockSpec((HIDDEN, IN_DIM), lambda b: (0, 0)),
            pl.BlockSpec((HIDDEN, 1), lambda b: (0, 0)),
            pl.BlockSpec((HIDDEN, HIDDEN), lambda b: (0, 0)),
            pl.BlockSpec((HIDDEN, 1), lambda b: (0, 0)),
            pl.BlockSpec((OUT3_DIM, HIDDEN), lambda b: (0, 0)),
            pl.BlockSpec((OUT3_DIM, 1), lambda b: (0, 0)),
            pl.BlockSpec((OUT3_DIM, 1), lambda b: (0, 0)),
        ],
        out_specs=pl.BlockSpec((OUT3_DIM, tb), lambda b: (0, b)),
        compiler_params=pltpu.CompilerParams(
            dimension_semantics=("parallel",),
        ),
        cost_estimate=pl.CostEstimate(
            flops=flops,
            transcendentals=transcendentals,
            bytes_accessed=bytes_accessed,
        ),
    )(x_t, w1c, b1, w2c, b2, w3c, b3, scale)

    # Layout glue back to the module's output shapes (outside the kernel).
    out_bm = out_fm[:, :B].T                               # (B, 32)
    theta = out_bm[:, :HALF].reshape(B, OUT_DIM, S_DIM)
    phi = out_bm[:, HALF:].reshape(B, OUT_DIM, S_DIM)
    return theta, phi


def init_params(key):
    """Xavier-uniform weights in PyTorch (out, in) layout + small random biases."""
    def xavier(k, fan_out, fan_in):
        bound = math.sqrt(6.0 / (fan_in + fan_out))
        return jax.random.uniform(
            k, (fan_out, fan_in), jnp.float32, minval=-bound, maxval=bound
        )

    k1, k2, k3, k4, k5, k6 = jax.random.split(key, 6)
    w1 = xavier(k1, HIDDEN, IN_DIM)
    w2 = xavier(k2, HIDDEN, HIDDEN)
    w3 = xavier(k3, OUT3_DIM, HIDDEN)
    b1 = jax.random.uniform(k4, (HIDDEN, 1), jnp.float32, minval=-0.1, maxval=0.1)
    b2 = jax.random.uniform(k5, (HIDDEN, 1), jnp.float32, minval=-0.1, maxval=0.1)
    b3 = jax.random.uniform(k6, (OUT3_DIM, 1), jnp.float32, minval=-0.1, maxval=0.1)
    return (w1, b1, w2, b2, w3, b3)


def _reference(x, params):
    """Pure-JAX reference mirroring the PyTorch forward (unsimplified)."""
    w1, b1, w2, b2, w3, b3 = params
    h1 = jnp.tanh(x @ w1.T + b1.T)
    h2 = jnp.tanh(h1 @ w2.T + b2.T)
    out = (h2 @ w3.T + b3.T).reshape(-1, 2 * OUT_DIM, S_DIM)
    theta = jnp.tanh(out[:, :OUT_DIM, :]) * math.pi
    phi = (jnp.tanh(out[:, OUT_DIM:, :]) * PHI_SCALE / 2.0
           - math.pi / 2.0 + PHI_SCALE / 2.0)
    return theta, phi


if __name__ == "__main__":
    BATCH = 300   # -> tb=256, grid=(2,): exercises padding + multi-step grid

    key = jax.random.PRNGKey(0)
    k_x, k_p = jax.random.split(key)
    x = jax.random.normal(k_x, (BATCH, IN_DIM), jnp.float32)
    params = init_params(k_p)

    theta_ref, phi_ref = _reference(x, params)

    # Default f32 path (exact; the safe path for v5e transcendentals).
    theta, phi = laplace_representation_func(x, params)
    jax.block_until_ready((theta, phi))
    assert theta.shape == (BATCH, OUT_DIM, S_DIM)
    assert phi.shape == (BATCH, OUT_DIM, S_DIM)
    assert jnp.allclose(theta, theta_ref, atol=1e-4, rtol=1e-4)
    assert jnp.allclose(phi, phi_ref, atol=1e-4, rtol=1e-4)

    # bf16 fast path (v6e/v7x): bf16 MXU operands + bf16 hidden tanhs, f32
    # epilogue/store.  Looser tolerance, gated per-generation by the caller.
    theta_bf, phi_bf = laplace_representation_func(x, params, precision="bf16")
    jax.block_until_ready((theta_bf, phi_bf))
    assert float(jnp.max(jnp.abs(theta_bf - theta_ref))) < 0.1
    assert float(jnp.max(jnp.abs(phi_bf - phi_ref))) < 0.1

    print("KERNEL_OK")
</pallas_src>

<mosaic_0001>
module attributes {stable_mosaic.version = 11 : i64} {
  func.func @_laplace_kernel(%arg0: i32, %arg1: memref<20x256xf32, #tpu.memory_space<vmem>>, %arg2: memref<64x20xf32, #tpu.memory_space<vmem>>, %arg3: memref<64x1xf32, #tpu.memory_space<vmem>>, %arg4: memref<64x64xf32, #tpu.memory_space<vmem>>, %arg5: memref<64x1xf32, #tpu.memory_space<vmem>>, %arg6: memref<32x64xf32, #tpu.memory_space<vmem>>, %arg7: memref<32x1xf32, #tpu.memory_space<vmem>>, %arg8: memref<32x1xf32, #tpu.memory_space<vmem>>, %arg9: memref<32x256xf32, #tpu.memory_space<vmem>>) attributes {dimension_semantics = [#tpu.dimension_semantics<parallel>], iteration_bounds = array<i64: 2>, scalar_prefetch = 0 : i64, scratch_operands = 0 : i64, tpu.core_type = #tpu.core_type<tc>, window_params = [{transform_indices = @transform_0, window_bounds = array<i64: 20, 256>}, {pipeline_mode = #tpu.pipeline_mode<synchronous>, transform_indices = @transform_1, window_bounds = array<i64: 64, 20>}, {pipeline_mode = #tpu.pipeline_mode<synchronous>, transform_indices = @transform_2, window_bounds = array<i64: 64, 1>}, {pipeline_mode = #tpu.pipeline_mode<synchronous>, transform_indices = @transform_3, window_bounds = array<i64: 64, 64>}, {pipeline_mode = #tpu.pipeline_mode<synchronous>, transform_indices = @transform_4, window_bounds = array<i64: 64, 1>}, {pipeline_mode = #tpu.pipeline_mode<synchronous>, transform_indices = @transform_5, window_bounds = array<i64: 32, 64>}, {pipeline_mode = #tpu.pipeline_mode<synchronous>, transform_indices = @transform_6, window_bounds = array<i64: 32, 1>}, {pipeline_mode = #tpu.pipeline_mode<synchronous>, transform_indices = @transform_7, window_bounds = array<i64: 32, 1>}, {transform_indices = @transform_8, window_bounds = array<i64: 32, 256>}]} {
    %c0 = arith.constant 0 : index
    %c0_0 = arith.constant 0 : index
    %0 = vector.load %arg1[%c0, %c0_0] : memref<20x256xf32, #tpu.memory_space<vmem>>, vector<20x256xf32>
    %c0_1 = arith.constant 0 : index
    %c0_2 = arith.constant 0 : index
    %1 = vector.load %arg2[%c0_1, %c0_2] : memref<64x20xf32, #tpu.memory_space<vmem>>, vector<64x20xf32>
    %cst = arith.constant dense<0.000000e+00> : vector<64x256xf32>
    %2 = tpu.matmul %1, %0, %cst {dimension_numbers = #tpu.dot_dimension_numbers<[1], [0], [0], [1], [0, 0, 1, 1], [], []>} : vector<64x20xf32>, vector<20x256xf32>, vector<64x256xf32> -> vector<64x256xf32>
    %c0_3 = arith.constant 0 : index
    %c0_4 = arith.constant 0 : index
    %3 = vector.load %arg3[%c0_3, %c0_4] : memref<64x1xf32, #tpu.memory_space<vmem>>, vector<64x1xf32>
    %4 = vector.broadcast %3 : vector<64x1xf32> to vector<64x256xf32>
    %5 = arith.addf %2, %4 : vector<64x256xf32>
    %6 = math.tanh %5 : vector<64x256xf32>
    %c0_5 = arith.constant 0 : index
    %c0_6 = arith.constant 0 : index
    %7 = vector.load %arg4[%c0_5, %c0_6] : memref<64x64xf32, #tpu.memory_space<vmem>>, vector<64x64xf32>
    %cst_7 = arith.constant dense<0.000000e+00> : vector<64x256xf32>
    %8 = tpu.matmul %7, %6, %cst_7 {dimension_numbers = #tpu.dot_dimension_numbers<[1], [0], [0], [1], [0, 0, 1, 1], [], []>} : vector<64x64xf32>, vector<64x256xf32>, vector<64x256xf32> -> vector<64x256xf32>
    %c0_8 = arith.constant 0 : index
    %c0_9 = arith.constant 0 : index
    %9 = vector.load %arg5[%c0_8, %c0_9] : memref<64x1xf32, #tpu.memory_space<vmem>>, vector<64x1xf32>
    %10 = vector.broadcast %9 : vector<64x1xf32> to vector<64x256xf32>
    %11 = arith.addf %8, %10 : vector<64x256xf32>
    %12 = math.tanh %11 : vector<64x256xf32>
    %c0_10 = arith.constant 0 : index
    %c0_11 = arith.constant 0 : index
    %13 = vector.load %arg6[%c0_10, %c0_11] : memref<32x64xf32, #tpu.memory_space<vmem>>, vector<32x64xf32>
    %cst_12 = arith.constant dense<0.000000e+00> : vector<32x256xf32>
    %14 = tpu.matmul %13, %12, %cst_12 {dimension_numbers = #tpu.dot_dimension_numbers<[1], [0], [0], [1], [0, 0, 1, 1], [], []>} : vector<32x64xf32>, vector<64x256xf32>, vector<32x256xf32> -> vector<32x256xf32>
    %c0_13 = arith.constant 0 : index
    %c0_14 = arith.constant 0 : index
    %15 = vector.load %arg7[%c0_13, %c0_14] : memref<32x1xf32, #tpu.memory_space<vmem>>, vector<32x1xf32>
    %16 = vector.broadcast %15 : vector<32x1xf32> to vector<32x256xf32>
    %17 = arith.addf %14, %16 : vector<32x256xf32>
    %18 = math.tanh %17 : vector<32x256xf32>
    %c0_15 = arith.constant 0 : index
    %c0_16 = arith.constant 0 : index
    %19 = vector.load %arg8[%c0_15, %c0_16] : memref<32x1xf32, #tpu.memory_space<vmem>>, vector<32x1xf32>
    %20 = vector.broadcast %19 : vector<32x1xf32> to vector<32x256xf32>
    %21 = arith.mulf %18, %20 : vector<32x256xf32>
    %c0_17 = arith.constant 0 : index
    %c0_18 = arith.constant 0 : index
    %22 = vector.load %arg9[%c0_17, %c0_18] : memref<32x256xf32, #tpu.memory_space<vmem>>, vector<32x256xf32>
    tpu.vector_store %arg9[%c0_17, %c0_18], %21 {strides = array<i32>} : memref<32x256xf32, #tpu.memory_space<vmem>>, vector<32x256xf32>,
    return
  }
  func.func @transform_0(%arg0: i32) -> (i32, i32) {
    %c0_i32 = arith.constant 0 : i32
    %c0_i32_0 = arith.constant 0 : i32
    return %c0_i32, %arg0 : i32, i32
  }
  func.func @transform_1(%arg0: i32) -> (i32, i32) {
    %c0_i32 = arith.constant 0 : i32
    %c0_i32_0 = arith.constant 0 : i32
    %c0_i32_1 = arith.constant 0 : i32
    return %c0_i32, %c0_i32_0 : i32, i32
  }
  func.func @transform_2(%arg0: i32) -> (i32, i32) {
    %c0_i32 = arith.constant 0 : i32
    %c0_i32_0 = arith.constant 0 : i32
    %c0_i32_1 = arith.constant 0 : i32
    return %c0_i32, %c0_i32_0 : i32, i32
  }
  func.func @transform_3(%arg0: i32) -> (i32, i32) {
    %c0_i32 = arith.constant 0 : i32
    %c0_i32_0 = arith.constant 0 : i32
    %c0_i32_1 = arith.constant 0 : i32
    return %c0_i32, %c0_i32_0 : i32, i32
  }
  func.func @transform_4(%arg0: i32) -> (i32, i32) {
    %c0_i32 = arith.constant 0 : i32
    %c0_i32_0 = arith.constant 0 : i32
    %c0_i32_1 = arith.constant 0 : i32
    return %c0_i32, %c0_i32_0 : i32, i32
  }
  func.func @transform_5(%arg0: i32) -> (i32, i32) {
    %c0_i32 = arith.constant 0 : i32
    %c0_i32_0 = arith.constant 0 : i32
    %c0_i32_1 = arith.constant 0 : i32
    return %c0_i32, %c0_i32_0 : i32, i32
  }
  func.func @transform_6(%arg0: i32) -> (i32, i32) {
    %c0_i32 = arith.constant 0 : i32
    %c0_i32_0 = arith.constant 0 : i32
    %c0_i32_1 = arith.constant 0 : i32
    return %c0_i32, %c0_i32_0 : i32, i32
  }
  func.func @transform_7(%arg0: i32) -> (i32, i32) {
    %c0_i32 = arith.constant 0 : i32
    %c0_i32_0 = arith.constant 0 : i32
    %c0_i32_1 = arith.constant 0 : i32
    return %c0_i32, %c0_i32_0 : i32, i32
  }
  func.func @transform_8(%arg0: i32) -> (i32, i32) {
    %c0_i32 = arith.constant 0 : i32
    %c0_i32_0 = arith.constant 0 : i32
    return %c0_i32, %arg0 : i32, i32
  }
}

</mosaic_0001>

<llo_original>
// kernel: tpu_custom_call.1
$region0: #{tpu_custom_call.1}
  #allocation0 [shape = 'u32[]', space=smem, size = 0x4, offset = 0x4, fixed_abs, tag = 'smem constant byte address 0x4 - core index']
  #allocation1 [shape = 'u32[144,128]{1,0:T(1,128)}', space=vmem, size = 0x12000, scoped, tag = 'internal scratch']
  %s0 = inlined_call_operand.vmem [shape: f32[20,512], index: 0, kind: input, shape index: {}]
  %s1 = inlined_call_operand.vmem [shape: f32[64,20], index: 1, kind: input, shape index: {}]
  %s2 = inlined_call_operand.vmem [shape: f32[64,1], index: 2, kind: input, shape index: {}]
  %s3 = inlined_call_operand.vmem [shape: f32[64,64], index: 3, kind: input, shape index: {}]
  %s4 = inlined_call_operand.vmem [shape: f32[64,1], index: 4, kind: input, shape index: {}]
  %s5 = inlined_call_operand.vmem [shape: f32[32,64], index: 5, kind: input, shape index: {}]
  %s6 = inlined_call_operand.vmem [shape: f32[32,1], index: 6, kind: input, shape index: {}]
  %s7 = inlined_call_operand.vmem [shape: f32[32,1], index: 7, kind: input, shape index: {}]
  %s8 = inlined_call_operand.hbm [shape: f32[32,512], index: 8, kind: output, shape index: {}]
  %s9 = sld [smem:[#allocation0]]
  $region88: #{tpu_custom_call.1} parent=0
    _
  %s11 = ssub.s32 1, %s9
  %s12 = scalar_select 0, %s11, %s9
  $region1: #{tpu_custom_call.1} parent=0
    #allocation2 [shape = 'u8[49152]{0}', space=vmem, size = 0xc000, scoped, tag = 'input window, operand 0']
    #allocation3 [shape = 'u8[65536]{0}', space=vmem, size = 0x10000, scoped, tag = 'output window, operand 0']
    #allocation4 [shape = 's32[2]{0}', space=sflag, size = 0x8, scoped, tag = 'scoped memory for tpu_custom_call.1']
    %13 = vsyncpa [#allocation4], 0
    %s14 = scalar_lea.sflag [#allocation4], 1
    %15 = vsyncpa %s14, 0
    loop: start=0, step=1, limit=4
    $region2: #{tpu_custom_call.1} parent=1 // loop_pre_header
      _
    $region3: #{tpu_custom_call.1} parent=1 // loop_header
      %s17 = sphi 0, %s21
      %p18 = scmp.ge.s32.totalorder %s17, 4
      %s27 = sphi 0, %s29
      %s30 = sphi 0, %s27
      %s31 = sphi 0, %s30
      %s47 = sphi 0, %s31
      %s51 = sphi 0, %s51
      %s53 = sphi 0, %s51
      %s54 = sphi 0, %s53
      %s68 = sphi 0, %s54
      %s72 = sphi 0, %s72
      %s74 = sphi 0, %s72
      %s75 = sphi 0, %s74
      %s89 = sphi 0, %s75
      %s93 = sphi 0, %s93
      %s95 = sphi 0, %s93
      %s96 = sphi 0, %s95
      %s110 = sphi 0, %s96
      %s114 = sphi 0, %s114
      %s116 = sphi 0, %s114
      %s117 = sphi 0, %s116
      %s131 = sphi 0, %s117
      %s135 = sphi 0, %s135
      %s137 = sphi 0, %s135
      %s138 = sphi 0, %s137
      %s152 = sphi 0, %s138
      %s156 = sphi 0, %s156
      %s158 = sphi 0, %s156
      %s159 = sphi 0, %s158
      %s173 = sphi 0, %s159
      %s177 = sphi 0, %s177
      %s179 = sphi 0, %s177
      %s180 = sphi 0, %s179
      %s194 = sphi 0, %s180
      %s200 = sphi 0, %s202
      %s203 = sphi 0, %s200
      %s204 = sphi 0, %s203
      %s220 = sphi 0, %s204
    $region4: #{tpu_custom_call.1} parent=1 // loop_header_branch
      %20 = sbr.rel (%p18) target = $region8
    $region5: #{tpu_custom_call.1} parent=1 // loop_body
      %s22 = ssub.s32 %s17, 1
      %s23 = ssub.s32 %s17, 2
      %s24 = sadd.s32 %s17, 1
      %s25 = ssub.s32 %s17, %s24
      %p26 = scmp.eq.s32.totalorder %s25, 0
      %s28 = sadd.s32 %s27, 1
      %s29 = scalar_select %p26, %s27, %s28
      %p32 = pneg %p26
      %p33 = scmp.eq.s32.totalorder %s17, 1
      %p34 = por %p32, %p33
      %p35 = scmp.ne.s32.totalorder %s27, %s30
      %p36 = scmp.eq.s32.totalorder %s17, 0
      %p37 = por %p35, %p36
      %p38 = scmp.ne.s32.totalorder %s27, %s30
      %p39 = scmp.eq.s32.totalorder %s22, 1
      %p40 = por %p38, %p39
      %p41 = scmp.ne.s32.totalorder %s30, %s31
      %p42 = scmp.eq.s32.totalorder %s22, 0
      %p43 = por %p41, %p42
      %p44 = scmp.ne.s32.totalorder %s30, %s31
      %p45 = scmp.eq.s32.totalorder %s23, 1
      %p46 = por %p44, %p45
      %p48 = scmp.ne.s32.totalorder %s31, %s47
      %p49 = scmp.eq.s32.totalorder %s23, 0
      %p50 = por %p48, %p49
      %s52 = sadd.s32 %s51, 1
      %p55 = scmp.eq.s32.totalorder %s17, 1
      %p56 = scmp.ne.s32.totalorder %s51, %s53
      %p57 = scmp.eq.s32.totalorder %s17, 0
      %p58 = por %p56, %p57
      %p59 = scmp.ne.s32.totalorder %s51, %s53
      %p60 = scmp.eq.s32.totalorder %s22, 1
      %p61 = por %p59, %p60
      %p62 = scmp.ne.s32.totalorder %s53, %s54
      %p63 = scmp.eq.s32.totalorder %s22, 0
      %p64 = por %p62, %p63
      %p65 = scmp.ne.s32.totalorder %s53, %s54
      %p66 = scmp.eq.s32.totalorder %s23, 1
      %p67 = por %p65, %p66
      %p69 = scmp.ne.s32.totalorder %s54, %s68
      %p70 = scmp.eq.s32.totalorder %s23, 0
      %p71 = por %p69, %p70
      %s73 = sadd.s32 %s72, 1
      %p76 = scmp.eq.s32.totalorder %s17, 1
      %p77 = scmp.ne.s32.totalorder %s72, %s74
      %p78 = scmp.eq.s32.totalorder %s17, 0
      %p79 = por %p77, %p78
      %p80 = scmp.ne.s32.totalorder %s72, %s74
      %p81 = scmp.eq.s32.totalorder %s22, 1
      %p82 = por %p80, %p81
      %p83 = scmp.ne.s32.totalorder %s74, %s75
      %p84 = scmp.eq.s32.totalorder %s22, 0
      %p85 = por %p83, %p84
      %p86 = scmp.ne.s32.totalorder %s74, %s75
      %p87 = scmp.eq.s32.totalorder %s23, 1
      %p88 = por %p86, %p87
      %p90 = scmp.ne.s32.totalorder %s75, %s89
      %p91 = scmp.eq.s32.totalorder %s23, 0
      %p92 = por %p90, %p91
      %s94 = sadd.s32 %s93, 1
      %p97 = scmp.eq.s32.totalorder %s17, 1
      %p98 = scmp.ne.s32.totalorder %s93, %s95
      %p99 = scmp.eq.s32.totalorder %s17, 0
      %p100 = por %p98, %p99
      %p101 = scmp.ne.s32.totalorder %s93, %s95
      %p102 = scmp.eq.s32.totalorder %s22, 1
      %p103 = por %p101, %p102
      %p104 = scmp.ne.s32.totalorder %s95, %s96
      %p105 = scmp.eq.s32.totalorder %s22, 0
      %p106 = por %p104, %p105
      %p107 = scmp.ne.s32.totalorder %s95, %s96
      %p108 = scmp.eq.s32.totalorder %s23, 1
      %p109 = por %p107, %p108
      %p111 = scmp.ne.s32.totalorder %s96, %s110
      %p112 = scmp.eq.s32.totalorder %s23, 0
      %p113 = por %p111, %p112
      %s115 = sadd.s32 %s114, 1
      %p118 = scmp.eq.s32.totalorder %s17, 1
      %p119 = scmp.ne.s32.totalorder %s114, %s116
      %p120 = scmp.eq.s32.totalorder %s17, 0
      %p121 = por %p119, %p120
      %p122 = scmp.ne.s32.totalorder %s114, %s116
      %p123 = scmp.eq.s32.totalorder %s22, 1
      %p124 = por %p122, %p123
      %p125 = scmp.ne.s32.totalorder %s116, %s117
      %p126 = scmp.eq.s32.totalorder %s22, 0
      %p127 = por %p125, %p126
      %p128 = scmp.ne.s32.totalorder %s116, %s117
      %p129 = scmp.eq.s32.totalorder %s23, 1
      %p130 = por %p128, %p129
      %p132 = scmp.ne.s32.totalorder %s117, %s131
      %p133 = scmp.eq.s32.totalorder %s23, 0
      %p134 = por %p132, %p133
      %s136 = sadd.s32 %s135, 1
      %p139 = scmp.eq.s32.totalorder %s17, 1
      %p140 = scmp.ne.s32.totalorder %s135, %s137
      %p141 = scmp.eq.s32.totalorder %s17, 0
      %p142 = por %p140, %p141
      %p143 = scmp.ne.s32.totalorder %s135, %s137
      %p144 = scmp.eq.s32.totalorder %s22, 1
      %p145 = por %p143, %p144
      %p146 = scmp.ne.s32.totalorder %s137, %s138
      %p147 = scmp.eq.s32.totalorder %s22, 0
      %p148 = por %p146, %p147
      %p149 = scmp.ne.s32.totalorder %s137, %s138
      %p150 = scmp.eq.s32.totalorder %s23, 1
      %p151 = por %p149, %p150
      %p153 = scmp.ne.s32.totalorder %s138, %s152
      %p154 = scmp.eq.s32.totalorder %s23, 0
      %p155 = por %p153, %p154
      %s157 = sadd.s32 %s156, 1
      %p160 = scmp.eq.s32.totalorder %s17, 1
      %p161 = scmp.ne.s32.totalorder %s156, %s158
      %p162 = scmp.eq.s32.totalorder %s17, 0
      %p163 = por %p161, %p162
      %p164 = scmp.ne.s32.totalorder %s156, %s158
      %p165 = scmp.eq.s32.totalorder %s22, 1
      %p166 = por %p164, %p165
      %p167 = scmp.ne.s32.totalorder %s158, %s159
      %p168 = scmp.eq.s32.totalorder %s22, 0
      %p169 = por %p167, %p168
      %p170 = scmp.ne.s32.totalorder %s158, %s159
      %p171 = scmp.eq.s32.totalorder %s23, 1
      %p172 = por %p170, %p171
      %p174 = scmp.ne.s32.totalorder %s159, %s173
      %p175 = scmp.eq.s32.totalorder %s23, 0
      %p176 = por %p174, %p175
      %s178 = sadd.s32 %s177, 1
      %p181 = scmp.eq.s32.totalorder %s17, 1
      %p182 = scmp.ne.s32.totalorder %s177, %s179
      %p183 = scmp.eq.s32.totalorder %s17, 0
      %p184 = por %p182, %p183
      %p185 = scmp.ne.s32.totalorder %s177, %s179
      %p186 = scmp.eq.s32.totalorder %s22, 1
      %p187 = por %p185, %p186
      %p188 = scmp.ne.s32.totalorder %s179, %s180
      %p189 = scmp.eq.s32.totalorder %s22, 0
      %p190 = por %p188, %p189
      %p191 = scmp.ne.s32.totalorder %s179, %s180
      %p192 = scmp.eq.s32.totalorder %s23, 1
      %p193 = por %p191, %p192
      %p195 = scmp.ne.s32.totalorder %s180, %s194
      %p196 = scmp.eq.s32.totalorder %s23, 0
      %p197 = por %p195, %p196
      %s198 = ssub.s32 %s17, %s24
      %p199 = scmp.eq.s32.totalorder %s198, 0
      %s201 = sadd.s32 %s200, 1
      %s202 = scalar_select %p199, %s200, %s201
      %p205 = pneg %p199
      %p206 = scmp.eq.s32.totalorder %s17, 1
      %p207 = por %p205, %p206
      %p208 = scmp.ne.s32.totalorder %s200, %s203
      %p209 = scmp.eq.s32.totalorder %s17, 0
      %p210 = por %p208, %p209
      %p211 = scmp.ne.s32.totalorder %s200, %s203
      %p212 = scmp.eq.s32.totalorder %s22, 1
      %p213 = por %p211, %p212
      %p214 = scmp.ne.s32.totalorder %s203, %s204
      %p215 = scmp.eq.s32.totalorder %s22, 0
      %p216 = por %p214, %p215
      %p217 = scmp.ne.s32.totalorder %s203, %s204
      %p218 = scmp.eq.s32.totalorder %s23, 1
      %p219 = por %p217, %p218
      %p221 = scmp.ne.s32.totalorder %s204, %s220
      %p222 = scmp.eq.s32.totalorder %s23, 0
      %p223 = por %p221, %p222
      %p224 = scmp.le.s32.totalorder 1, %s17
      %p225 = scmp.lt.s32.totalorder %s17, 3
      %p226 = pnand %p224, %p225
      %p227 = pneg %p226
      // Predicated region
      $region9: #{tpu_custom_call.1} parent=5 // pred_check
        _
      $region10: #{tpu_custom_call.1} parent=5 // pred_check_branch
        %229 = sbr.rel (%p226) target = $region12
      $region11: #{tpu_custom_call.1} parent=5 // pred_region
        %s230 = ssub.s32 %s17, 1
        // Predicated region
        $region13: #{tpu_custom_call.1} parent=11 // pred_check
          %p231 = pneg %p64
        $region14: #{tpu_custom_call.1} parent=11 // pred_check_branch
          %233 = sbr.rel (%p231) target = $region16
        $region15: #{tpu_custom_call.1} parent=11 // pred_region
          _
        $region16: #{tpu_custom_call.1} parent=11 // pred_fallthru
          _
        // Predicated region
        $region17: #{tpu_custom_call.1} parent=11 // pred_check
          %p234 = pneg %p85
        $region18: #{tpu_custom_call.1} parent=11 // pred_check_branch
          %236 = sbr.rel (%p234) target = $region20
        $region19: #{tpu_custom_call.1} parent=11 // pred_region
          _
        $region20: #{tpu_custom_call.1} parent=11 // pred_fallthru
          _
        // Predicated region
        $region21: #{tpu_custom_call.1} parent=11 // pred_check
          %p237 = pneg %p106
        $region22: #{tpu_custom_call.1} parent=11 // pred_check_branch
          %239 = sbr.rel (%p237) target = $region24
        $region23: #{tpu_custom_call.1} parent=11 // pred_region
          _
        $region24: #{tpu_custom_call.1} parent=11 // pred_fallthru
          _
        // Predicated region
        $region25: #{tpu_custom_call.1} parent=11 // pred_check
          %p240 = pneg %p127
        $region26: #{tpu_custom_call.1} parent=11 // pred_check_branch
          %242 = sbr.rel (%p240) target = $region28
        $region27: #{tpu_custom_call.1} parent=11 // pred_region
          _
        $region28: #{tpu_custom_call.1} parent=11 // pred_fallthru
          _
        // Predicated region
        $region29: #{tpu_custom_call.1} parent=11 // pred_check
          %p243 = pneg %p148
        $region30: #{tpu_custom_call.1} parent=11 // pred_check_branch
          %245 = sbr.rel (%p243) target = $region32
        $region31: #{tpu_custom_call.1} parent=11 // pred_region
          _
        $region32: #{tpu_custom_call.1} parent=11 // pred_fallthru
          _
        // Predicated region
        $region33: #{tpu_custom_call.1} parent=11 // pred_check
          %p246 = pneg %p169
        $region34: #{tpu_custom_call.1} parent=11 // pred_check_branch
          %248 = sbr.rel (%p246) target = $region36
        $region35: #{tpu_custom_call.1} parent=11 // pred_region
          _
        $region36: #{tpu_custom_call.1} parent=11 // pred_fallthru
          _
        // Predicated region
        $region37: #{tpu_custom_call.1} parent=11 // pred_check
          %p249 = pneg %p190
        $region38: #{tpu_custom_call.1} parent=11 // pred_check_branch
          %251 = sbr.rel (%p249) target = $region40
        $region39: #{tpu_custom_call.1} parent=11 // pred_region
          _
        $region40: #{tpu_custom_call.1} parent=11 // pred_fallthru
          _
      $region12: #{tpu_custom_call.1} parent=5 // pred_fallthru
        _
      %p252 = scmp.lt.s32.totalorder %s17, 2
      // Predicated region
      $region41: #{tpu_custom_call.1} parent=5 // pred_check
        %p253 = pneg %p252
      $region42: #{tpu_custom_call.1} parent=5 // pred_check_branch
        %255 = sbr.rel (%p253) target = $region44
      $region43: #{tpu_custom_call.1} parent=5 // pred_region
        // Predicated region
        $region45: #{tpu_custom_call.1} parent=43 // pred_check
          %p256 = pneg %p37
        $region46: #{tpu_custom_call.1} parent=43 // pred_check_branch
          %258 = sbr.rel (%p256) target = $region48
        $region47: #{tpu_custom_call.1} parent=43 // pred_region
          %s259 = sand.u32 %s27, 1
          %s260 = sand.u32 %s27, 1
          %s261 = smul.addr %s260, 48
          %s262 = scalar_lea.vmem [#allocation2], %s261
          %s263 = smul.u32 2, %s17
          %s264 = smul.addr %s263, 8
          %s265 = scalar_lea.vmem %s0, %s264
          // Predicated region
          $region49: #{tpu_custom_call.1} parent=47 // pred_check
            _
          $region50: #{tpu_custom_call.1} parent=47 // pred_check_branch
            %267 = sbr.rel (0) target = $region52
          $region51: #{tpu_custom_call.1} parent=47 // pred_region
            // Predicated region
            $region53: #{tpu_custom_call.1} parent=51 // pred_check
              _
            $region54: #{tpu_custom_call.1} parent=51 // pred_check_branch
              %269 = sbr.rel (0) target = $region56
            $region55: #{tpu_custom_call.1} parent=51 // pred_region
              loop: start=0, step=1, limit=1
              $region57: #{tpu_custom_call.1} parent=55 // loop_pre_header
                _
              $region58: #{tpu_custom_call.1} parent=55 // loop_header
                %s271 = sphi 0, %s275
                %p272 = scmp.ge.s32.totalorder %s271, 1
                %s276 = sphi %s265, %s265
                %s277 = sphi %s262, %s262
              $region59: #{tpu_custom_call.1} parent=55 // loop_header_branch
                %274 = sbr.rel (%p272) target = $region63
              $region60: #{tpu_custom_call.1} parent=55 // loop_body
                %v278 = vld [vmem:[%s276] sm:$0xff]
                %279 = vst [vmem:[%s277] sm:$0xff] %v278
                %v280 = vld [vmem:[%s276 + $0x8] sm:$0xff]
                %281 = vst [vmem:[%s277 + $0x8] sm:$0xff] %v280
                %v282 = vld [vmem:[%s276 + $0x20] sm:$0xff]
                %283 = vst [vmem:[%s277 + $0x10] sm:$0xff] %v282
                %v284 = vld [vmem:[%s276 + $0x28] sm:$0xff]
                %285 = vst [vmem:[%s277 + $0x18] sm:$0xff] %v284
                %v286 = vld [vmem:[%s276 + $0x40] sm:$0xff]
                %287 = vst [vmem:[%s277 + $0x20] sm:$0xff] %v286
                %v288 = vld [vmem:[%s276 + $0x48] sm:$0xff]
                %289 = vst [vmem:[%s277 + $0x28] sm:$0xff] %v288
              $region61: #{tpu_custom_call.1} parent=55 // loop_footer
                %s275 = sadd.s32 1, %s271
              $region62: #{tpu_custom_call.1} parent=55 // loop_footer_branch
                %270 = sbr.rel target = $region58
              $region63: #{tpu_custom_call.1} parent=55 // loop_exit
                _
            $region56: #{tpu_custom_call.1} parent=51 // pred_fallthru
              _
            // Predicated region
            $region64: #{tpu_custom_call.1} parent=51 // pred_check
              _
            $region65: #{tpu_custom_call.1} parent=51 // pred_check_branch
              %291 = sbr.rel target = $region67
            $region66: #{tpu_custom_call.1} parent=51 // pred_region
              _
            $region67: #{tpu_custom_call.1} parent=51 // pred_fallthru
              _
          $region52: #{tpu_custom_call.1} parent=47 // pred_fallthru
            _
          %292 = vnop
        $region48: #{tpu_custom_call.1} parent=43 // pred_fallthru
          _
      $region44: #{tpu_custom_call.1} parent=5 // pred_fallthru
        _
      %p293 = scmp.le.s32.totalorder 1, %s17
      %p294 = scmp.lt.s32.totalorder %s17, 3
      %p295 = pnand %p293, %p294
      %p296 = pneg %p295
      // Predicated region
      $region68: #{tpu_custom_call.1} parent=5 // pred_check
        _
      $region69: #{tpu_custom_call.1} parent=5 // pred_check_branch
        %298 = sbr.rel (%p295) target = $region71
      $region70: #{tpu_custom_call.1} parent=5 // pred_region
        %s299 = ssub.s32 %s17, 1
        %s300 = sand.u32 %s30, 1
        %s301 = sand.u32 %s30, 1
        %s302 = smul.addr %s301, 48
        %s303 = scalar_lea.vmem [#allocation2], %s302
        // Predicated region
        $region72: #{tpu_custom_call.1} parent=70 // pred_check
          %p304 = pneg %p43
        $region73: #{tpu_custom_call.1} parent=70 // pred_check_branch
          %306 = sbr.rel (%p304) target = $region75
        $region74: #{tpu_custom_call.1} parent=70 // pred_region
          _
        $region75: #{tpu_custom_call.1} parent=70 // pred_fallthru
          _
        %s307 = sand.u32 %s30, 1
        %s308 = sand.u32 %s30, 1
        %s309 = smul.addr %s308, 48
        %s310 = scalar_lea.vmem [#allocation2], %s309
        %p311 = pneg %p43
        %p312 = pneg %p40
        %p313 = pneg %p64
        %p314 = pneg %p61
        %p315 = pneg %p85
        %p316 = pneg %p82
        %p317 = pneg %p106
        %p318 = pneg %p103
        %p319 = pneg %p127
        %p320 = pneg %p124
        %p321 = pneg %p148
        %p322 = pneg %p145
        %p323 = pneg %p169
        %p324 = pneg %p166
        %p325 = pneg %p190
        %p326 = pneg %p187
        %p327 = pneg %p216
        %p328 = pneg %p213
        %s329 = sand.u32 %s203, 1
        %s330 = scalar_lea.sflag [#allocation4], %s329
        %s331 = sand.u32 %s203, 1
        %s332 = smul.addr %s331, 64
        %s333 = scalar_lea.vmem [#allocation3], %s332
        %s334 = smul.u32 2, %s22
        %s335 = smul.u32 2, %s22
        %v336 = vld [vmem:[%s303] sm:$0xff]
        %v337 = vld [vmem:[%s303 + $0x8] sm:$0xff]
        %v338 = vld [vmem:[%s303 + $0x10] sm:$0xff]
        %v339 = vld [vmem:[%s303 + $0x18] sm:$0xff]
        %v340 = vld [vmem:[%s303 + $0x20] sm:$0xf]
        %v341 = vld [vmem:[%s303 + $0x28] sm:$0xf]
        %v342 = vld [vmem:[%s1] sm:$0xff]
        %v343 = vld [vmem:[%s1 + $0x8] sm:$0xff]
        %v344 = vld [vmem:[%s1 + $0x10] sm:$0xff]
        %v345 = vld [vmem:[%s1 + $0x18] sm:$0xff]
        %v346 = vld [vmem:[%s1 + $0x20] sm:$0xff]
        %v347 = vld [vmem:[%s1 + $0x28] sm:$0xff]
        %v348 = vld [vmem:[%s1 + $0x30] sm:$0xff]
        %v349 = vld [vmem:[%s1 + $0x38] sm:$0xff]
        %v350 = vld [vmem:[%s2] sm:$0xff]
        %v351 = vld [vmem:[%s2 + $0x8] sm:$0xff]
        %v352 = vld [vmem:[%s2 + $0x10] sm:$0xff]
        %v353 = vld [vmem:[%s2 + $0x18] sm:$0xff]
        %v354 = vld [vmem:[%s2 + $0x20] sm:$0xff]
        %v355 = vld [vmem:[%s2 + $0x28] sm:$0xff]
        %v356 = vld [vmem:[%s2 + $0x30] sm:$0xff]
        %v357 = vld [vmem:[%s2 + $0x38] sm:$0xff]
        %359 = vset.pattern.permute.xlu0 0
        %360 = vperm.xlu0 %359, %v350
        %v361 = vpop.permute.xlu0 %360
        %364 = vset.pattern.permute.xlu0 0
        %365 = vperm.xlu0 %364, %v351
        %v366 = vpop.permute.xlu0 %365
        %369 = vset.pattern.permute.xlu0 0
        %370 = vperm.xlu0 %369, %v352
        %v371 = vpop.permute.xlu0 %370
        %374 = vset.pattern.permute.xlu0 0
        %375 = vperm.xlu0 %374, %v353
        %v376 = vpop.permute.xlu0 %375
        %379 = vset.pattern.permute.xlu0 0
        %380 = vperm.xlu0 %379, %v354
        %v381 = vpop.permute.xlu0 %380
        %384 = vset.pattern.permute.xlu0 0
        %385 = vperm.xlu0 %384, %v355
        %v386 = vpop.permute.xlu0 %385
        %389 = vset.pattern.permute.xlu0 0
        %390 = vperm.xlu0 %389, %v356
        %v391 = vpop.permute.xlu0 %390
        %394 = vset.pattern.permute.xlu0 0
        %395 = vperm.xlu0 %394, %v357
        %v396 = vpop.permute.xlu0 %395
        %vm398 = vcmask 162816
        %v400 = vsel %vm398, %v342, 0
        %v403 = vsel %vm398, %v343, 0
        %v406 = vsel %vm398, %v344, 0
        %v409 = vsel %vm398, %v345, 0
        %v412 = vsel %vm398, %v346, 0
        %v415 = vsel %vm398, %v347, 0
        %v418 = vsel %vm398, %v348, 0
        %v421 = vsel %vm398, %v349, 0
        %vm423 = vcmask 1043456
        %v425 = vsel %vm423, %v340, 0
        %v428 = vsel %vm423, %v341, 0
        %430 = vmatprep.subr.mxu0 %v337
        %431 = vmatpush1.msra.mxu0 %v336
        %432 = vmatprep.subr.mxu0 %v339
        %433 = vmatpush1.msra.mxu0 %v338
        %434 = vmatprep.subr.mxu0 %v428
        %435 = vmatpush1.msra.mxu0 %v425
        %436 = vmatprep.subr.mxu0 0.0
        %437 = vmatpush1.msra.mxu0 0.0
        %438 = vmatprep.subr.mxu0 0.0
        %439 = vmatpush1.msra.mxu0 0.0
        %440 = vmatprep.subr.mxu0 0.0
        %441 = vmatpush1.msra.mxu0 0.0
        %442 = vmatprep.subr.mxu0 0.0
        %443 = vmatpush1.msra.mxu0 0.0
        %444 = vmatprep.subr.mxu0 0.0
        %445 = vmatpush1.msra.mxu0 0.0
        %446 = vmatprep.subr.mxu0 0.0
        %447 = vmatpush1.msra.mxu0 0.0
        %448 = vmatprep.subr.mxu0 0.0
        %449 = vmatpush1.msra.mxu0 0.0
        %450 = vmatprep.subr.mxu0 0.0
        %451 = vmatpush1.msra.mxu0 0.0
        %452 = vmatprep.subr.mxu0 0.0
        %453 = vmatpush1.msra.mxu0 0.0
        %454 = vmatprep.subr.mxu0 0.0
        %455 = vmatpush1.msra.mxu0 0.0
        %456 = vmatprep.subr.mxu0 0.0
        %457 = vmatpush1.msra.mxu0 0.0
        %458 = vmatprep.subr.mxu0 0.0
        %459 = vmatpush1.msra.mxu0 0.0
        %460 = vmatprep.subr.mxu0 0.0
        %461 = vmatpush1.msra.mxu0 0.0
        %462 = vmatprep.subr.mxu0 0.0
        %463 = vmatpush1.msra.mxu0 0.0
        %464 = vmatprep.subr.mxu0 0.0
        %465 = vmatpush1.msra.mxu0 0.0
        %466 = vmatprep.subr.mxu0 0.0
        %467 = vmatpush1.msra.mxu0 0.0
        %468 = vmatprep.subr.mxu0 0.0
        %469 = vmatpush1.msra.mxu0 0.0
        %470 = vmatprep.subr.mxu0 0.0
        %471 = vmatpush1.msra.mxu0 0.0
        %472 = vmatprep.subr.mxu0 0.0
        %473 = vmatpush1.msra.mxu0 0.0
        %474 = vmatprep.subr.mxu0 0.0
        %475 = vmatpush1.msra.mxu0 0.0
        %476 = vmatprep.subr.mxu0 0.0
        %477 = vmatpush1.msra.mxu0 0.0
        %478 = vmatprep.subr.mxu0 0.0
        %479 = vmatpush1.msra.mxu0 0.0
        %480 = vmatprep.subr.mxu0 0.0
        %481 = vmatpush1.msra.mxu0 0.0
        %482 = vmatprep.subr.mxu0 0.0
        %483 = vmatpush1.msra.mxu0 0.0
        %484 = vmatprep.subr.mxu0 0.0
        %485 = vmatpush1.msra.mxu0 0.0
        %486 = vmatprep.subr.mxu0 0.0
        %487 = vmatpush1.msra.mxu0 0.0
        %488 = vmatprep.subr.mxu0 0.0
        %489 = vmatpush1.msra.mxu0 0.0
        %490 = vmatprep.subr.mxu0 0.0
        %491 = vmatpush1.msra.mxu0 0.0
        %492 = vmatprep.subr.mxu0 0.0
        %493 = vmatpush1.msra.mxu0 0.0
        %494 = vmatprep.mubr.f32.mxu0 0.0
        %495 = vmatmul.mubr.f32.gmra.mrb[0].mxu0 %v400
        %v496 = vpop.f32.mrb[0].mxu0
        %v497 = vadd.f32 %v361, %v496
        %v498 = vpop.f32.mrb[0].mxu0
        %v499 = vadd.f32 %v361, %v498
        %500 = vmatprep.mubr.f32.mxu0 0.0
        %501 = vmatmul.mubr.f32.gmra.mrb[0].mxu0 %v403
        %v502 = vpop.f32.mrb[0].mxu0
        %v503 = vadd.f32 %v366, %v502
        %v504 = vpop.f32.mrb[0].mxu0
        %v505 = vadd.f32 %v366, %v504
        %506 = vmatprep.mubr.f32.mxu0 0.0
        %507 = vmatmul.mubr.f32.gmra.mrb[0].mxu0 %v406
        %v508 = vpop.f32.mrb[0].mxu0
        %v509 = vadd.f32 %v371, %v508
        %v510 = vpop.f32.mrb[0].mxu0
        %v511 = vadd.f32 %v371, %v510
        %512 = vmatprep.mubr.f32.mxu0 0.0
        %513 = vmatmul.mubr.f32.gmra.mrb[0].mxu0 %v409
        %v514 = vpop.f32.mrb[0].mxu0
        %v515 = vadd.f32 %v376, %v514
        %v516 = vpop.f32.mrb[0].mxu0
        %v517 = vadd.f32 %v376, %v516
        %518 = vmatprep.mubr.f32.mxu0 0.0
        %519 = vmatmul.mubr.f32.gmra.mrb[0].mxu0 %v412
        %v520 = vpop.f32.mrb[0].mxu0
        %v521 = vadd.f32 %v381, %v520
        %v522 = vpop.f32.mrb[0].mxu0
        %v523 = vadd.f32 %v381, %v522
        %524 = vmatprep.mubr.f32.mxu0 0.0
        %525 = vmatmul.mubr.f32.gmra.mrb[0].mxu0 %v415
        %v526 = vpop.f32.mrb[0].mxu0
        %v527 = vadd.f32 %v386, %v526
        %v528 = vpop.f32.mrb[0].mxu0
        %v529 = vadd.f32 %v386, %v528
        %530 = vmatprep.mubr.f32.mxu0 0.0
        %531 = vmatmul.mubr.f32.gmra.mrb[0].mxu0 %v418
        %v532 = vpop.f32.mrb[0].mxu0
        %v533 = vadd.f32 %v391, %v532
        %v534 = vpop.f32.mrb[0].mxu0
        %v535 = vadd.f32 %v391, %v534
        %536 = vmatprep.mubr.f32.mxu0 0.0
        %537 = vmatmul.mubr.f32.gmra.mrb[0].mxu0 %v421
        %v538 = vpop.f32.mrb[0].mxu0
        %v539 = vadd.f32 %v396, %v538
        %v540 = vpop.f32.mrb[0].mxu0
        %v541 = vadd.f32 %v396, %v540
        %542 = vdwg.mxu0
        %v543 = vtanh.pop %v497
        %v544 = vtanh.pop %v499
        %v545 = vtanh.pop %v503
        %v546 = vtanh.pop %v505
        %v547 = vtanh.pop %v509
        %v548 = vtanh.pop %v511
        %v549 = vtanh.pop %v515
        %v550 = vtanh.pop %v517
        %v551 = vtanh.pop %v521
        %v552 = vtanh.pop %v523
        %v553 = vtanh.pop %v527
        %v554 = vtanh.pop %v529
        %v555 = vtanh.pop %v533
        %v556 = vtanh.pop %v535
        %v557 = vtanh.pop %v539
        %v558 = vtanh.pop %v541
        %v559 = vld [vmem:[%s3] sm:$0xff]
        %v560 = vld [vmem:[%s3 + $0x8] sm:$0xff]
        %v561 = vld [vmem:[%s3 + $0x10] sm:$0xff]
        %v562 = vld [vmem:[%s3 + $0x18] sm:$0xff]
        %v563 = vld [vmem:[%s3 + $0x20] sm:$0xff]
        %v564 = vld [vmem:[%s3 + $0x28] sm:$0xff]
        %v565 = vld [vmem:[%s3 + $0x30] sm:$0xff]
        %v566 = vld [vmem:[%s3 + $0x38] sm:$0xff]
        %v567 = vld [vmem:[%s4] sm:$0xff]
        %v568 = vld [vmem:[%s4 + $0x8] sm:$0xff]
        %v569 = vld [vmem:[%s4 + $0x10] sm:$0xff]
        %v570 = vld [vmem:[%s4 + $0x18] sm:$0xff]
        %v571 = vld [vmem:[%s4 + $0x20] sm:$0xff]
        %v572 = vld [vmem:[%s4 + $0x28] sm:$0xff]
        %v573 = vld [vmem:[%s4 + $0x30] sm:$0xff]
        %v574 = vld [vmem:[%s4 + $0x38] sm:$0xff]
        %576 = vset.pattern.permute.xlu0 0
        %577 = vperm.xlu0 %576, %v567
        %v578 = vpop.permute.xlu0 %577
        %581 = vset.pattern.permute.xlu0 0
        %582 = vperm.xlu0 %581, %v568
        %v583 = vpop.permute.xlu0 %582
        %586 = vset.pattern.permute.xlu0 0
        %587 = vperm.xlu0 %586, %v569
        %v588 = vpop.permute.xlu0 %587
        %591 = vset.pattern.permute.xlu0 0
        %592 = vperm.xlu0 %591, %v570
        %v593 = vpop.permute.xlu0 %592
        %596 = vset.pattern.permute.xlu0 0
        %597 = vperm.xlu0 %596, %v571
        %v598 = vpop.permute.xlu0 %597
        %601 = vset.pattern.permute.xlu0 0
        %602 = vperm.xlu0 %601, %v572
        %v603 = vpop.permute.xlu0 %602
        %606 = vset.pattern.permute.xlu0 0
        %607 = vperm.xlu0 %606, %v573
        %v608 = vpop.permute.xlu0 %607
        %611 = vset.pattern.permute.xlu0 0
        %612 = vperm.xlu0 %611, %v574
        %v613 = vpop.permute.xlu0 %612
        %vm615 = vcmask 523264
        %v617 = vsel %vm615, %v559, 0
        %v620 = vsel %vm615, %v560, 0
        %v623 = vsel %vm615, %v561, 0
        %v626 = vsel %vm615, %v562, 0
        %v629 = vsel %vm615, %v563, 0
        %v632 = vsel %vm615, %v564, 0
        %v635 = vsel %vm615, %v565, 0
        %v638 = vsel %vm615, %v566, 0
        %640 = vmatprep.subr.mxu0 %v544
        %641 = vmatpush1.msra.mxu0 %v543
        %642 = vmatprep.subr.mxu0 %v546
        %643 = vmatpush1.msra.mxu0 %v545
        %644 = vmatprep.subr.mxu0 %v548
        %645 = vmatpush1.msra.mxu0 %v547
        %646 = vmatprep.subr.mxu0 %v550
        %647 = vmatpush1.msra.mxu0 %v549
        %648 = vmatprep.subr.mxu0 %v552
        %649 = vmatpush1.msra.mxu0 %v551
        %650 = vmatprep.subr.mxu0 %v554
        %651 = vmatpush1.msra.mxu0 %v553
        %652 = vmatprep.subr.mxu0 %v556
        %653 = vmatpush1.msra.mxu0 %v555
        %654 = vmatprep.subr.mxu0 %v558
        %655 = vmatpush1.msra.mxu0 %v557
        %656 = vmatprep.subr.mxu0 0.0
        %657 = vmatpush1.msra.mxu0 0.0
        %658 = vmatprep.subr.mxu0 0.0
        %659 = vmatpush1.msra.mxu0 0.0
        %660 = vmatprep.subr.mxu0 0.0
        %661 = vmatpush1.msra.mxu0 0.0
        %662 = vmatprep.subr.mxu0 0.0
        %663 = vmatpush1.msra.mxu0 0.0
        %664 = vmatprep.subr.mxu0 0.0
        %665 = vmatpush1.msra.mxu0 0.0
        %666 = vmatprep.subr.mxu0 0.0
        %667 = vmatpush1.msra.mxu0 0.0
        %668 = vmatprep.subr.mxu0 0.0
        %669 = vmatpush1.msra.mxu0 0.0
        %670 = vmatprep.subr.mxu0 0.0
        %671 = vmatpush1.msra.mxu0 0.0
        %672 = vmatprep.subr.mxu0 0.0
        %673 = vmatpush1.msra.mxu0 0.0
        %674 = vmatprep.subr.mxu0 0.0
        %675 = vmatpush1.msra.mxu0 0.0
        %676 = vmatprep.subr.mxu0 0.0
        %677 = vmatpush1.msra.mxu0 0.0
        %678 = vmatprep.subr.mxu0 0.0
        %679 = vmatpush1.msra.mxu0 0.0
        %680 = vmatprep.subr.mxu0 0.0
        %681 = vmatpush1.msra.mxu0 0.0
        %682 = vmatprep.subr.mxu0 0.0
        %683 = vmatpush1.msra.mxu0 0.0
        %684 = vmatprep.subr.mxu0 0.0
        %685 = vmatpush1.msra.mxu0 0.0
        %686 = vmatprep.subr.mxu0 0.0
        %687 = vmatpush1.msra.mxu0 0.0
        %688 = vmatprep.subr.mxu0 0.0
        %689 = vmatpush1.msra.mxu0 0.0
        %690 = vmatprep.subr.mxu0 0.0
        %691 = vmatpush1.msra.mxu0 0.0
        %692 = vmatprep.subr.mxu0 0.0
        %693 = vmatpush1.msra.mxu0 0.0
        %694 = vmatprep.subr.mxu0 0.0
        %695 = vmatpush1.msra.mxu0 0.0
        %696 = vmatprep.subr.mxu0 0.0
        %697 = vmatpush1.msra.mxu0 0.0
        %698 = vmatprep.subr.mxu0 0.0
        %699 = vmatpush1.msra.mxu0 0.0
        %700 = vmatprep.subr.mxu0 0.0
        %701 = vmatpush1.msra.mxu0 0.0
        %702 = vmatprep.subr.mxu0 0.0
        %703 = vmatpush1.msra.mxu0 0.0
        %704 = vmatprep.mubr.f32.mxu0 0.0
        %705 = vmatmul.mubr.f32.gmra.mrb[0].mxu0 %v617
        %v706 = vpop.f32.mrb[0].mxu0
        %v707 = vadd.f32 %v578, %v706
        %v708 = vpop.f32.mrb[0].mxu0
        %v709 = vadd.f32 %v578, %v708
        %710 = vmatprep.mubr.f32.mxu0 0.0
        %711 = vmatmul.mubr.f32.gmra.mrb[0].mxu0 %v620
        %v712 = vpop.f32.mrb[0].mxu0
        %v713 = vadd.f32 %v583, %v712
        %v714 = vpop.f32.mrb[0].mxu0
        %v715 = vadd.f32 %v583, %v714
        %716 = vmatprep.mubr.f32.mxu0 0.0
        %717 = vmatmul.mubr.f32.gmra.mrb[0].mxu0 %v623
        %v718 = vpop.f32.mrb[0].mxu0
        %v719 = vadd.f32 %v588, %v718
        %v720 = vpop.f32.mrb[0].mxu0
        %v721 = vadd.f32 %v588, %v720
        %722 = vmatprep.mubr.f32.mxu0 0.0
        %723 = vmatmul.mubr.f32.gmra.mrb[0].mxu0 %v626
        %v724 = vpop.f32.mrb[0].mxu0
        %v725 = vadd.f32 %v593, %v724
        %v726 = vpop.f32.mrb[0].mxu0
        %v727 = vadd.f32 %v593, %v726
        %728 = vmatprep.mubr.f32.mxu0 0.0
        %729 = vmatmul.mubr.f32.gmra.mrb[0].mxu0 %v629
        %v730 = vpop.f32.mrb[0].mxu0
        %v731 = vadd.f32 %v598, %v730
        %v732 = vpop.f32.mrb[0].mxu0
        %v733 = vadd.f32 %v598, %v732
        %734 = vmatprep.mubr.f32.mxu0 0.0
        %735 = vmatmul.mubr.f32.gmra.mrb[0].mxu0 %v632
        %v736 = vpop.f32.mrb[0].mxu0
        %v737 = vadd.f32 %v603, %v736
        %v738 = vpop.f32.mrb[0].mxu0
        %v739 = vadd.f32 %v603, %v738
        %740 = vmatprep.mubr.f32.mxu0 0.0
        %741 = vmatmul.mubr.f32.gmra.mrb[0].mxu0 %v635
        %v742 = vpop.f32.mrb[0].mxu0
        %v743 = vadd.f32 %v608, %v742
        %v744 = vpop.f32.mrb[0].mxu0
        %v745 = vadd.f32 %v608, %v744
        %746 = vmatprep.mubr.f32.mxu0 0.0
        %747 = vmatmul.mubr.f32.gmra.mrb[0].mxu0 %v638
        %v748 = vpop.f32.mrb[0].mxu0
        %v749 = vadd.f32 %v613, %v748
        %v750 = vpop.f32.mrb[0].mxu0
        %v751 = vadd.f32 %v613, %v750
        %752 = vdwg.mxu0
        %v753 = vtanh.pop %v707
        %v754 = vtanh.pop %v709
        %v755 = vtanh.pop %v713
        %v756 = vtanh.pop %v715
        %v757 = vtanh.pop %v719
        %v758 = vtanh.pop %v721
        %v759 = vtanh.pop %v725
        %v760 = vtanh.pop %v727
        %v761 = vtanh.pop %v731
        %v762 = vtanh.pop %v733
        %v763 = vtanh.pop %v737
        %v764 = vtanh.pop %v739
        %v765 = vtanh.pop %v743
        %v766 = vtanh.pop %v745
        %v767 = vtanh.pop %v749
        %v768 = vtanh.pop %v751
        %v769 = vld [vmem:[%s5] sm:$0xff]
        %v770 = vld [vmem:[%s5 + $0x8] sm:$0xff]
        %v771 = vld [vmem:[%s5 + $0x10] sm:$0xff]
        %v772 = vld [vmem:[%s5 + $0x18] sm:$0xff]
        %v773 = vld [vmem:[%s6] sm:$0xff]
        %v774 = vld [vmem:[%s6 + $0x8] sm:$0xff]
        %v775 = vld [vmem:[%s6 + $0x10] sm:$0xff]
        %v776 = vld [vmem:[%s6 + $0x18] sm:$0xff]
        %778 = vset.pattern.permute.xlu0 0
        %779 = vperm.xlu0 %778, %v773
        %v780 = vpop.permute.xlu0 %779
        %783 = vset.pattern.permute.xlu0 0
        %784 = vperm.xlu0 %783, %v774
        %v785 = vpop.permute.xlu0 %784
        %788 = vset.pattern.permute.xlu0 0
        %789 = vperm.xlu0 %788, %v775
        %v790 = vpop.permute.xlu0 %789
        %793 = vset.pattern.permute.xlu0 0
        %794 = vperm.xlu0 %793, %v776
        %v795 = vpop.permute.xlu0 %794
        %v798 = vsel %vm615, %v769, 0
        %v801 = vsel %vm615, %v770, 0
        %v804 = vsel %vm615, %v771, 0
        %v807 = vsel %vm615, %v772, 0
        %809 = vmatprep.subr.mxu0 %v754
        %810 = vmatpush1.msra.mxu0 %v753
        %811 = vmatprep.subr.mxu0 %v756
        %812 = vmatpush1.msra.mxu0 %v755
        %813 = vmatprep.subr.mxu0 %v758
        %814 = vmatpush1.msra.mxu0 %v757
        %815 = vmatprep.subr.mxu0 %v760
        %816 = vmatpush1.msra.mxu0 %v759
        %817 = vmatprep.subr.mxu0 %v762
        %818 = vmatpush1.msra.mxu0 %v761
        %819 = vmatprep.subr.mxu0 %v764
        %820 = vmatpush1.msra.mxu0 %v763
        %821 = vmatprep.subr.mxu0 %v766
        %822 = vmatpush1.msra.mxu0 %v765
        %823 = vmatprep.subr.mxu0 %v768
        %824 = vmatpush1.msra.mxu0 %v767
        %825 = vmatprep.subr.mxu0 0.0
        %826 = vmatpush1.msra.mxu0 0.0
        %827 = vmatprep.subr.mxu0 0.0
        %828 = vmatpush1.msra.mxu0 0.0
        %829 = vmatprep.subr.mxu0 0.0
        %830 = vmatpush1.msra.mxu0 0.0
        %831 = vmatprep.subr.mxu0 0.0
        %832 = vmatpush1.msra.mxu0 0.0
        %833 = vmatprep.subr.mxu0 0.0
        %834 = vmatpush1.msra.mxu0 0.0
        %835 = vmatprep.subr.mxu0 0.0
        %836 = vmatpush1.msra.mxu0 0.0
        %837 = vmatprep.subr.mxu0 0.0
        %838 = vmatpush1.msra.mxu0 0.0
        %839 = vmatprep.subr.mxu0 0.0
        %840 = vmatpush1.msra.mxu0 0.0
        %841 = vmatprep.subr.mxu0 0.0
        %842 = vmatpush1.msra.mxu0 0.0
        %843 = vmatprep.subr.mxu0 0.0
        %844 = vmatpush1.msra.mxu0 0.0
        %845 = vmatprep.subr.mxu0 0.0
        %846 = vmatpush1.msra.mxu0 0.0
        %847 = vmatprep.subr.mxu0 0.0
        %848 = vmatpush1.msra.mxu0 0.0
        %849 = vmatprep.subr.mxu0 0.0
        %850 = vmatpush1.msra.mxu0 0.0
        %851 = vmatprep.subr.mxu0 0.0
        %852 = vmatpush1.msra.mxu0 0.0
        %853 = vmatprep.subr.mxu0 0.0
        %854 = vmatpush1.msra.mxu0 0.0
        %855 = vmatprep.subr.mxu0 0.0
        %856 = vmatpush1.msra.mxu0 0.0
        %857 = vmatprep.subr.mxu0 0.0
        %858 = vmatpush1.msra.mxu0 0.0
        %859 = vmatprep.subr.mxu0 0.0
        %860 = vmatpush1.msra.mxu0 0.0
        %861 = vmatprep.subr.mxu0 0.0
        %862 = vmatpush1.msra.mxu0 0.0
        %863 = vmatprep.subr.mxu0 0.0
        %864 = vmatpush1.msra.mxu0 0.0
        %865 = vmatprep.subr.mxu0 0.0
        %866 = vmatpush1.msra.mxu0 0.0
        %867 = vmatprep.subr.mxu0 0.0
        %868 = vmatpush1.msra.mxu0 0.0
        %869 = vmatprep.subr.mxu0 0.0
        %870 = vmatpush1.msra.mxu0 0.0
        %871 = vmatprep.subr.mxu0 0.0
        %872 = vmatpush1.msra.mxu0 0.0
        %873 = vmatprep.mubr.f32.mxu0 0.0
        %874 = vmatmul.mubr.f32.gmra.mrb[0].mxu0 %v798
        %v875 = vpop.f32.mrb[0].mxu0
        %v876 = vadd.f32 %v780, %v875
        %v877 = vpop.f32.mrb[0].mxu0
        %v878 = vadd.f32 %v780, %v877
        %879 = vmatprep.mubr.f32.mxu0 0.0
        %880 = vmatmul.mubr.f32.gmra.mrb[0].mxu0 %v801
        %v881 = vpop.f32.mrb[0].mxu0
        %v882 = vadd.f32 %v785, %v881
        %v883 = vpop.f32.mrb[0].mxu0
        %v884 = vadd.f32 %v785, %v883
        %885 = vmatprep.mubr.f32.mxu0 0.0
        %886 = vmatmul.mubr.f32.gmra.mrb[0].mxu0 %v804
        %v887 = vpop.f32.mrb[0].mxu0
        %v888 = vadd.f32 %v790, %v887
        %v889 = vpop.f32.mrb[0].mxu0
        %v890 = vadd.f32 %v790, %v889
        %891 = vmatprep.mubr.f32.mxu0 0.0
        %892 = vmatmul.mubr.f32.gmra.mrb[0].mxu0 %v807
        %v893 = vpop.f32.mrb[0].mxu0
        %v894 = vadd.f32 %v795, %v893
        %v895 = vpop.f32.mrb[0].mxu0
        %v896 = vadd.f32 %v795, %v895
        %897 = vdwg.mxu0
        %v898 = vtanh.pop %v876
        %v899 = vtanh.pop %v878
        %v900 = vtanh.pop %v882
        %v901 = vtanh.pop %v884
        %v902 = vtanh.pop %v888
        %v903 = vtanh.pop %v890
        %v904 = vtanh.pop %v894
        %v905 = vtanh.pop %v896
        %v906 = vld [vmem:[%s7] sm:$0xff]
        %v907 = vld [vmem:[%s7 + $0x8] sm:$0xff]
        %v908 = vld [vmem:[%s7 + $0x10] sm:$0xff]
        %v909 = vld [vmem:[%s7 + $0x18] sm:$0xff]
        %911 = vset.pattern.permute.xlu0 0
        %912 = vperm.xlu0 %911, %v906
        %v913 = vpop.permute.xlu0 %912
        %916 = vset.pattern.permute.xlu0 0
        %917 = vperm.xlu0 %916, %v907
        %v918 = vpop.permute.xlu0 %917
        %921 = vset.pattern.permute.xlu0 0
        %922 = vperm.xlu0 %921, %v908
        %v923 = vpop.permute.xlu0 %922
        %926 = vset.pattern.permute.xlu0 0
        %927 = vperm.xlu0 %926, %v909
        %v928 = vpop.permute.xlu0 %927
        %v930 = vmul.f32 %v898, %v913
        %v931 = vmul.f32 %v899, %v913
        %v932 = vmul.f32 %v900, %v918
        %v933 = vmul.f32 %v901, %v918
        %v934 = vmul.f32 %v902, %v923
        %v935 = vmul.f32 %v903, %v923
        %v936 = vmul.f32 %v904, %v928
        %v937 = vmul.f32 %v905, %v928
        %938 = vst [vmem:[%s333] sm:$0xff] %v930
        %939 = vst [vmem:[%s333 + $0x8] sm:$0xff] %v931
        %940 = vst [vmem:[%s333 + $0x10] sm:$0xff] %v932
        %941 = vst [vmem:[%s333 + $0x18] sm:$0xff] %v933
        %942 = vst [vmem:[%s333 + $0x20] sm:$0xff] %v934
        %943 = vst [vmem:[%s333 + $0x28] sm:$0xff] %v935
        %944 = vst [vmem:[%s333 + $0x30] sm:$0xff] %v936
        %945 = vst [vmem:[%s333 + $0x38] sm:$0xff] %v937
        %s946 = sand.u32 %s203, 1
        %s947 = scalar_lea.sflag [#allocation4], %s946
        %s948 = sand.u32 %s203, 1
        %s949 = smul.addr %s948, 64
        %s950 = scalar_lea.vmem [#allocation3], %s949
        // Predicated region
        $region76: #{tpu_custom_call.1} parent=70 // pred_check
          %p951 = pneg %p213
        $region77: #{tpu_custom_call.1} parent=70 // pred_check_branch
          %953 = sbr.rel (%p951) target = $region79
        $region78: #{tpu_custom_call.1} parent=70 // pred_region
          %s954 = smul.u32 2, %s22
          %s956 = ssub.s32 1024, 1024
          %957 = vsyncadd %s947, %s956
          %s958 = smul.addr %s954, 128
          %s959 = scalar_lea.hbm %s8, %s958
          %s960 = sshll.u32 %s950, 4
          %s961 = int_to_ptr.vmem [resolvable:$true] %s960
          %966 = dma.vmem_to_hbm [thread:$0]  %s961, 1024, %s959, %s947, 256, 512, 16
        $region79: #{tpu_custom_call.1} parent=70 // pred_fallthru
          _
      $region71: #{tpu_custom_call.1} parent=5 // pred_fallthru
        _
      %p967 = scmp.le.s32.totalorder 2, %s17
      // Predicated region
      $region80: #{tpu_custom_call.1} parent=5 // pred_check
        %p968 = pneg %p967
      $region81: #{tpu_custom_call.1} parent=5 // pred_check_branch
        %970 = sbr.rel (%p968) target = $region83
      $region82: #{tpu_custom_call.1} parent=5 // pred_region
        %s971 = ssub.s32 %s17, 2
        // Predicated region
        $region84: #{tpu_custom_call.1} parent=82 // pred_check
          %p972 = pneg %p219
        $region85: #{tpu_custom_call.1} parent=82 // pred_check_branch
          %974 = sbr.rel (%p972) target = $region87
        $region86: #{tpu_custom_call.1} parent=82 // pred_region
          %s975 = sand.u32 %s204, 1
          %s976 = scalar_lea.sflag [#allocation4], %s975
          %s977 = sand.u32 %s204, 1
          %s978 = smul.addr %s977, 64
          %s979 = scalar_lea.vmem [#allocation3], %s978
          %980 = dma.done %s976, 1024
        $region87: #{tpu_custom_call.1} parent=82 // pred_fallthru
          _
      $region83: #{tpu_custom_call.1} parent=5 // pred_fallthru
        _
    $region6: #{tpu_custom_call.1} parent=1 // loop_footer
      %s21 = sadd.s32 1, %s17
    $region7: #{tpu_custom_call.1} parent=1 // loop_footer_branch
      %16 = sbr.rel target = $region3
    $region8: #{tpu_custom_call.1} parent=1 // loop_exit
      _
    %981 = vsyncpa [#allocation4], 1
    %s982 = scalar_lea.sflag [#allocation4], 1
    %983 = vsyncpa %s982, 1

</llo_original>
